<compile_context>
chip_gen: v7x
topology: tpu7x:2x2x1
jax: 0.10.0
libtpu: 0.0.40
codegen_flags: <defaults>
</compile_context>

<pallas_src>
import functools

import jax
import jax.numpy as jnp
from jax.experimental import pallas as pl
from jax.experimental.pallas import tpu as pltpu

SUBLANE = 8  # f32 sublane group


def _round_up(n: int, m: int) -> int:
    return ((n + m - 1) // m) * m


def _mlp_kernel(x_ref, slab_ref, o_ref, *, layer_meta, compute_dtype):
    """layer_meta = ((row_offset, in_dim, out_dim), ...). Everything stays in vregs."""
    h = x_ref[...].astype(jnp.float32)
    n_layers = len(layer_meta)
    for i, (row, k, n) in enumerate(layer_meta):
        w = slab_ref[row:row + k, :n].astype(compute_dtype)          # (k, n)
        b = slab_ref[row + k:row + k + 1, :n].astype(jnp.float32)    # (1, n)
        h = jnp.dot(h.astype(compute_dtype), w,
                    preferred_element_type=jnp.float32)
        h = h + b
        if i < n_layers - 1:
            # leaky_relu, PyTorch default negative_slope = 0.01
            h = jnp.where(h > 0, h, 0.01 * h)
    o_ref[...] = h.astype(o_ref.dtype)


def init_params(key, input_size, hidden_sizes, output_size):
    """PyTorch-Linear-style uniform init. Weight stored as (in, out) = W_pt.T."""
    sizes = [input_size] + list(hidden_sizes) + [output_size]
    params = []
    for fan_in, fan_out in zip(sizes[:-1], sizes[1:]):
        key, kw, kb = jax.random.split(key, 3)
        bound = 1.0 / (fan_in ** 0.5)
        w = jax.random.uniform(kw, (fan_in, fan_out), jnp.float32, -bound, bound)
        b = jax.random.uniform(kb, (fan_out,), jnp.float32, -bound, bound)
        params.append((w, b))
    return params


def pack_params(params, param_dtype=jnp.bfloat16):
    """Pack every (W, b) into one 2D slab; per-layer block = [W; b] padded to 8 rows."""
    max_n = max(w.shape[1] for w, _ in params)
    blocks, layer_meta, row = [], [], 0
    for w, b in params:
        k, n = w.shape
        rows = _round_up(k + 1, SUBLANE)
        blk = jnp.zeros((rows, max_n), param_dtype)
        blk = blk.at[:k, :n].set(w.astype(param_dtype))
        blk = blk.at[k, :n].set(b.astype(param_dtype))
        blocks.append(blk)
        layer_meta.append((row, k, n))
        row += rows
    slab = jnp.concatenate(blocks, axis=0)
    return slab, tuple(layer_meta)


@functools.partial(jax.jit, static_argnames=("layer_meta", "compute_dtype"))
def network_forward(x, slab, layer_meta, compute_dtype=jnp.bfloat16):
    """Forward pass matching PyTorch Network.forward, as one fused Pallas kernel."""
    batch = x.shape[0]
    out_size = layer_meta[-1][2]
    kernel = functools.partial(_mlp_kernel, layer_meta=layer_meta,
                               compute_dtype=compute_dtype)
    vmem = pl.BlockSpec(memory_space=pltpu.MemorySpace.VMEM)
    return pl.pallas_call(
        kernel,
        out_shape=jax.ShapeDtypeStruct((batch, out_size), x.dtype),
        in_specs=[vmem, vmem],
        out_specs=vmem,
    )(x, slab)


def network_reference(params, x, param_dtype=jnp.bfloat16):
    """Pure-JAX reference using the same (bf16-quantized) parameter values."""
    h = x
    for i, (w, b) in enumerate(params):
        wq = w.astype(param_dtype).astype(jnp.float32)
        bq = b.astype(param_dtype).astype(jnp.float32)
        h = h @ wq + bq
        if i < len(params) - 1:
            h = jnp.where(h > 0, h, 0.01 * h)
    return h


if __name__ == "__main__":
    input_size = 32
    hidden_sizes = [64, 48]
    output_size = 16
    batch = 8

    key = jax.random.PRNGKey(0)
    key, kx = jax.random.split(key)
    x = jax.random.normal(kx, (batch, input_size), jnp.float32)

    params = init_params(key, input_size, hidden_sizes, output_size)
    slab, layer_meta = pack_params(params, jnp.bfloat16)

    out = network_forward(x, slab, layer_meta)
    out = jax.block_until_ready(out)

    ref = network_reference(params, x, jnp.bfloat16)
    assert out.shape == (batch, output_size)
    max_err = jnp.max(jnp.abs(out - ref))
    assert jnp.allclose(out, ref, atol=1e-3, rtol=1e-3), f"mismatch vs reference (max err {max_err})"

    print("KERNEL_OK")
</pallas_src>

<mosaic_0001>
module attributes {stable_mosaic.version = 11 : i64} {
  func.func @_mlp_kernel(%arg0: memref<8x32xf32, #tpu.memory_space<vmem>>, %arg1: memref<168x64xbf16, #tpu.memory_space<vmem>>, %arg2: memref<8x16xf32, #tpu.memory_space<vmem>>) attributes {dimension_semantics = [], scalar_prefetch = 0 : i64, scratch_operands = 0 : i64, tpu.core_type = #tpu.core_type<tc>} {
    %c0 = arith.constant 0 : index
    %c0_0 = arith.constant 0 : index
    %0 = vector.load %arg0[%c0, %c0_0] : memref<8x32xf32, #tpu.memory_space<vmem>>, vector<8x32xf32>
    %c0_1 = arith.constant 0 : index
    %c0_2 = arith.constant 0 : index
    %1 = vector.load %arg1[%c0_1, %c0_2] : memref<168x64xbf16, #tpu.memory_space<vmem>>, vector<32x64xbf16>
    %c32 = arith.constant 32 : index
    %c0_3 = arith.constant 0 : index
    %2 = vector.load %arg1[%c32, %c0_3] : memref<168x64xbf16, #tpu.memory_space<vmem>>, vector<1x64xbf16>
    %3 = arith.extf %2 : vector<1x64xbf16> to vector<1x64xf32>
    %4 = arith.truncf %0 : vector<8x32xf32> to vector<8x32xbf16>
    %cst = arith.constant dense<0.000000e+00> : vector<8x64xf32>
    %5 = tpu.matmul %4, %1, %cst {dimension_numbers = #tpu.dot_dimension_numbers<[1], [0], [0], [1], [0, 0, 1, 1], [], []>} : vector<8x32xbf16>, vector<32x64xbf16>, vector<8x64xf32> -> vector<8x64xf32>
    %6 = vector.broadcast %3 : vector<1x64xf32> to vector<8x64xf32>
    %7 = arith.addf %5, %6 : vector<8x64xf32>
    %cst_4 = arith.constant 0.000000e+00 : f32
    %8 = vector.broadcast %cst_4 : f32 to vector<8x64xf32>
    %9 = arith.cmpf ogt, %7, %8 : vector<8x64xf32>
    %cst_5 = arith.constant 0.00999999977 : f32
    %10 = vector.broadcast %cst_5 : f32 to vector<8x64xf32>
    %11 = arith.mulf %10, %7 : vector<8x64xf32>
    %12 = arith.select %9, %7, %11 : vector<8x64xi1>, vector<8x64xf32>
    %c40 = arith.constant 40 : index
    %c0_6 = arith.constant 0 : index
    %13 = vector.load %arg1[%c40, %c0_6] : memref<168x64xbf16, #tpu.memory_space<vmem>>, vector<64x48xbf16>
    %c104 = arith.constant 104 : index
    %c0_7 = arith.constant 0 : index
    %14 = vector.load %arg1[%c104, %c0_7] : memref<168x64xbf16, #tpu.memory_space<vmem>>, vector<1x48xbf16>
    %15 = arith.extf %14 : vector<1x48xbf16> to vector<1x48xf32>
    %16 = arith.truncf %12 : vector<8x64xf32> to vector<8x64xbf16>
    %cst_8 = arith.constant dense<0.000000e+00> : vector<8x48xf32>
    %17 = tpu.matmul %16, %13, %cst_8 {dimension_numbers = #tpu.dot_dimension_numbers<[1], [0], [0], [1], [0, 0, 1, 1], [], []>} : vector<8x64xbf16>, vector<64x48xbf16>, vector<8x48xf32> -> vector<8x48xf32>
    %18 = vector.broadcast %15 : vector<1x48xf32> to vector<8x48xf32>
    %19 = arith.addf %17, %18 : vector<8x48xf32>
    %cst_9 = arith.constant 0.000000e+00 : f32
    %20 = vector.broadcast %cst_9 : f32 to vector<8x48xf32>
    %21 = arith.cmpf ogt, %19, %20 : vector<8x48xf32>
    %cst_10 = arith.constant 0.00999999977 : f32
    %22 = vector.broadcast %cst_10 : f32 to vector<8x48xf32>
    %23 = arith.mulf %22, %19 : vector<8x48xf32>
    %24 = arith.select %21, %19, %23 : vector<8x48xi1>, vector<8x48xf32>
    %c112 = arith.constant 112 : index
    %c0_11 = arith.constant 0 : index
    %25 = vector.load %arg1[%c112, %c0_11] : memref<168x64xbf16, #tpu.memory_space<vmem>>, vector<48x16xbf16>
    %c160 = arith.constant 160 : index
    %c0_12 = arith.constant 0 : index
    %26 = vector.load %arg1[%c160, %c0_12] : memref<168x64xbf16, #tpu.memory_space<vmem>>, vector<1x16xbf16>
    %27 = arith.extf %26 : vector<1x16xbf16> to vector<1x16xf32>
    %28 = arith.truncf %24 : vector<8x48xf32> to vector<8x48xbf16>
    %cst_13 = arith.constant dense<0.000000e+00> : vector<8x16xf32>
    %29 = tpu.matmul %28, %25, %cst_13 {dimension_numbers = #tpu.dot_dimension_numbers<[1], [0], [0], [1], [0, 0, 1, 1], [], []>} : vector<8x48xbf16>, vector<48x16xbf16>, vector<8x16xf32> -> vector<8x16xf32>
    %30 = vector.broadcast %27 : vector<1x16xf32> to vector<8x16xf32>
    %31 = arith.addf %29, %30 : vector<8x16xf32>
    %c0_14 = arith.constant 0 : index
    %c0_15 = arith.constant 0 : index
    %32 = vector.load %arg2[%c0_14, %c0_15] : memref<8x16xf32, #tpu.memory_space<vmem>>, vector<8x16xf32>
    tpu.vector_store %arg2[%c0_14, %c0_15], %31 {strides = array<i32>} : memref<8x16xf32, #tpu.memory_space<vmem>>, vector<8x16xf32>,
    return
  }
}

</mosaic_0001>

<llo_original>
// kernel: network_forward.1
$region0: #{network_forward.1}
  #allocation0 [shape = 'u32[]', space=smem, size = 0x4, offset = 0x4, fixed_abs, tag = 'smem constant byte address 0x4 - core index']
  #allocation1 [shape = 'u32[144,128]{1,0:T(1,128)}', space=vmem, size = 0x12000, scoped, tag = 'internal scratch']
  %s0 = inlined_call_operand.vmem [shape: f32[8,32], index: 0, kind: input, shape index: {}]
  %s1 = inlined_call_operand.vmem [shape: bf16[168,64], index: 1, kind: input, shape index: {}]
  %s2 = inlined_call_operand.hbm [shape: f32[8,16], index: 2, kind: output, shape index: {}]
  %s3 = sld [smem:[#allocation0]]
  $region18: #{network_forward.1} parent=0
    _
  %s5 = ssub.s32 1, %s3
  %s6 = scalar_select 0, %s5, %s3
  $region1: #{network_forward.1} parent=0
    #allocation2 [shape = 'u8[4096]{0}', space=vmem, size = 0x1000, scoped, tag = 'output window, operand 0, single buffered']
    #allocation3 [shape = 's32[1]{0}', space=sflag, size = 0x4, scoped, tag = 'scoped memory for network_forward.1']
    %7 = vsyncpa [#allocation3], 0
    // Predicated region
    $region2: #{network_forward.1} parent=1 // pred_check
      _
    $region3: #{network_forward.1} parent=1 // pred_check_branch
      %9 = sbr.rel (0) target = $region5
    $region4: #{network_forward.1} parent=1 // pred_region
      _
    $region5: #{network_forward.1} parent=1 // pred_fallthru
      _
    // Predicated region
    $region6: #{network_forward.1} parent=1 // pred_check
      _
    $region7: #{network_forward.1} parent=1 // pred_check_branch
      %11 = sbr.rel (0) target = $region9
    $region8: #{network_forward.1} parent=1 // pred_region
      _
    $region9: #{network_forward.1} parent=1 // pred_fallthru
      _
    %v13 = vld [vmem:[%s0] sm:$0xff]
    %v14 = vld [vmem:[%s1] sm:$0xf]
    %v15 = vld [vmem:[%s1 + $0x4] sm:$0xf]
    %v16 = vld [vmem:[%s1 + $0x8] sm:$0xf]
    %v17 = vld [vmem:[%s1 + $0xc] sm:$0xf]
    %v18 = vld [vmem:[%s1 + $0x10] sm:$0x1]
    %v19 = vunpack.c.l.bf16 %v18
    %v20 = vpack.c.bf16 %v13, %v13
    %v21 = vlaneseq
    %v22 = vshrl.u32 %v21, 7
    %v23 = vsub.s32 0, %v22
    %v24 = vrot.slane %v19, %v23
    %v29 = vunpack.c.l.b16 %v14
    %v30 = vunpack.c.l.b16 %v15
    %v31 = vunpack.c.l.b16 %v16
    %v32 = vunpack.c.l.b16 %v17
    %v33 = vpack.c.b16 %v30, %v29
    %v34 = vpack.c.b16 %v32, %v31
    %vm37 = vcmask 261120
    %v39 = vsel %vm37, %v20, 0
    %41 = vmatprep.subr.bf16.mxu0 0
    %42 = vmatpush1.bf16.msra.mxu0 %v33
    %43 = vmatprep.subr.bf16.mxu0 0
    %44 = vmatpush1.bf16.msra.mxu0 %v34
    %45 = vmatprep.subr.bf16.mxu0 0
    %46 = vmatpush1.bf16.msra.mxu0 0
    %47 = vmatprep.subr.bf16.mxu0 0
    %48 = vmatpush1.bf16.msra.mxu0 0
    %49 = vmatprep.subr.bf16.mxu0 0
    %50 = vmatpush1.bf16.msra.mxu0 0
    %51 = vmatprep.subr.bf16.mxu0 0
    %52 = vmatpush1.bf16.msra.mxu0 0
    %53 = vmatprep.subr.bf16.mxu0 0
    %54 = vmatpush1.bf16.msra.mxu0 0
    %55 = vmatprep.subr.bf16.mxu0 0
    %56 = vmatpush1.bf16.msra.mxu0 0
    %57 = vmatprep.subr.bf16.mxu0 0
    %58 = vmatpush1.bf16.msra.mxu0 0
    %59 = vmatprep.subr.bf16.mxu0 0
    %60 = vmatpush1.bf16.msra.mxu0 0
    %61 = vmatprep.subr.bf16.mxu0 0
    %62 = vmatpush1.bf16.msra.mxu0 0
    %63 = vmatprep.subr.bf16.mxu0 0
    %64 = vmatpush1.bf16.msra.mxu0 0
    %65 = vmatprep.subr.bf16.mxu0 0
    %66 = vmatpush1.bf16.msra.mxu0 0
    %67 = vmatprep.subr.bf16.mxu0 0
    %68 = vmatpush1.bf16.msra.mxu0 0
    %69 = vmatprep.subr.bf16.mxu0 0
    %70 = vmatpush1.bf16.msra.mxu0 0
    %71 = vmatprep.subr.bf16.mxu0 0
    %72 = vmatpush1.bf16.msra.mxu0 0
    %73 = vmatprep.mubr.bf16.mxu0 0
    %74 = vmatmul.mubr.bf16.gmra.mrb[0].mxu0 %v39
    %v75 = vpop.f32.mrb[0].mxu0
    %v76 = vadd.f32 %v24, %v75
    %v77 = vpop.f32.mrb[0].mxu0
    %v78 = vpop.f32.mrb[0].mxu0
    %v79 = vpop.f32.mrb[0].mxu0
    %80 = vdwg.mxu0
    %vm81 = vcmp.gt.f32.partialorder %v76, 0.0
    %v82 = vmul.f32 %v76, 0.01
    %v83 = vsel %vm81, %v76, %v82
    %v84 = vld [vmem:[%s1 + $0x14] sm:$0xf]
    %v85 = vld [vmem:[%s1 + $0x18] sm:$0xf]
    %v86 = vld [vmem:[%s1 + $0x1c] sm:$0xf]
    %v87 = vld [vmem:[%s1 + $0x20] sm:$0xf]
    %v88 = vld [vmem:[%s1 + $0x24] sm:$0xf]
    %v89 = vld [vmem:[%s1 + $0x28] sm:$0xf]
    %v90 = vld [vmem:[%s1 + $0x2c] sm:$0xf]
    %v91 = vld [vmem:[%s1 + $0x30] sm:$0xf]
    %v92 = vld [vmem:[%s1 + $0x34] sm:$0x1]
    %v93 = vunpack.c.l.bf16 %v92
    %v94 = vpack.c.bf16 %v83, %v83
    %v95 = vlaneseq
    %v96 = vshrl.u32 %v95, 7
    %v97 = vsub.s32 0, %v96
    %v98 = vrot.slane %v93, %v97
    %v107 = vunpack.c.l.b16 %v84
    %v108 = vunpack.c.l.b16 %v85
    %v109 = vunpack.c.l.b16 %v86
    %v110 = vunpack.c.l.b16 %v87
    %v111 = vunpack.c.l.b16 %v88
    %v112 = vunpack.c.l.b16 %v89
    %v113 = vunpack.c.l.b16 %v90
    %v114 = vunpack.c.l.b16 %v91
    %v115 = vpack.c.b16 %v108, %v107
    %v116 = vpack.c.b16 %v110, %v109
    %v117 = vpack.c.b16 %v112, %v111
    %v118 = vpack.c.b16 %v114, %v113
    %vm123 = vcmask 523264
    %v125 = vsel %vm123, %v94, 0
    %127 = vmatprep.subr.bf16.mxu0 0
    %128 = vmatpush1.bf16.msra.mxu0 %v115
    %129 = vmatprep.subr.bf16.mxu0 0
    %130 = vmatpush1.bf16.msra.mxu0 %v116
    %131 = vmatprep.subr.bf16.mxu0 0
    %132 = vmatpush1.bf16.msra.mxu0 %v117
    %133 = vmatprep.subr.bf16.mxu0 0
    %134 = vmatpush1.bf16.msra.mxu0 %v118
    %135 = vmatprep.subr.bf16.mxu0 0
    %136 = vmatpush1.bf16.msra.mxu0 0
    %137 = vmatprep.subr.bf16.mxu0 0
    %138 = vmatpush1.bf16.msra.mxu0 0
    %139 = vmatprep.subr.bf16.mxu0 0
    %140 = vmatpush1.bf16.msra.mxu0 0
    %141 = vmatprep.subr.bf16.mxu0 0
    %142 = vmatpush1.bf16.msra.mxu0 0
    %143 = vmatprep.subr.bf16.mxu0 0
    %144 = vmatpush1.bf16.msra.mxu0 0
    %145 = vmatprep.subr.bf16.mxu0 0
    %146 = vmatpush1.bf16.msra.mxu0 0
    %147 = vmatprep.subr.bf16.mxu0 0
    %148 = vmatpush1.bf16.msra.mxu0 0
    %149 = vmatprep.subr.bf16.mxu0 0
    %150 = vmatpush1.bf16.msra.mxu0 0
    %151 = vmatprep.subr.bf16.mxu0 0
    %152 = vmatpush1.bf16.msra.mxu0 0
    %153 = vmatprep.subr.bf16.mxu0 0
    %154 = vmatpush1.bf16.msra.mxu0 0
    %155 = vmatprep.subr.bf16.mxu0 0
    %156 = vmatpush1.bf16.msra.mxu0 0
    %157 = vmatprep.subr.bf16.mxu0 0
    %158 = vmatpush1.bf16.msra.mxu0 0
    %159 = vmatprep.mubr.bf16.mxu0 0
    %160 = vmatmul.mubr.bf16.gmra.mrb[0].mxu0 %v125
    %v161 = vpop.f32.mrb[0].mxu0
    %v162 = vadd.f32 %v98, %v161
    %v163 = vpop.f32.mrb[0].mxu0
    %v164 = vpop.f32.mrb[0].mxu0
    %v165 = vpop.f32.mrb[0].mxu0
    %166 = vdwg.mxu0
    %vm167 = vcmp.gt.f32.partialorder %v162, 0.0
    %v168 = vmul.f32 %v162, 0.01
    %v169 = vsel %vm167, %v162, %v168
    %v170 = vld [vmem:[%s1 + $0x38] sm:$0xf]
    %v171 = vld [vmem:[%s1 + $0x3c] sm:$0xf]
    %v172 = vld [vmem:[%s1 + $0x40] sm:$0xf]
    %v173 = vld [vmem:[%s1 + $0x44] sm:$0xf]
    %v174 = vld [vmem:[%s1 + $0x48] sm:$0xf]
    %v175 = vld [vmem:[%s1 + $0x4c] sm:$0xf]
    %v176 = vld [vmem:[%s1 + $0x50] sm:$0x1]
    %v177 = vunpack.c.l.bf16 %v176
    %v178 = vpack.c.bf16 %v169, %v169
    %v179 = vlaneseq
    %v180 = vshrl.u32 %v179, 7
    %v181 = vsub.s32 0, %v180
    %v182 = vrot.slane %v177, %v181
    %v189 = vunpack.c.l.b16 %v170
    %v190 = vunpack.c.l.b16 %v171
    %v191 = vunpack.c.l.b16 %v172
    %v192 = vunpack.c.l.b16 %v173
    %v193 = vunpack.c.l.b16 %v174
    %v194 = vunpack.c.l.b16 %v175
    %v195 = vpack.c.b16 %v190, %v189
    %v196 = vpack.c.b16 %v192, %v191
    %v197 = vpack.c.b16 %v194, %v193
    %vm201 = vcmask 392192
    %v203 = vsel %vm201, %v178, 0
    %205 = vmatprep.subr.bf16.mxu0 0
    %206 = vmatpush1.bf16.msra.mxu0 %v195
    %207 = vmatprep.subr.bf16.mxu0 0
    %208 = vmatpush1.bf16.msra.mxu0 %v196
    %209 = vmatprep.subr.bf16.mxu0 0
    %210 = vmatpush1.bf16.msra.mxu0 %v197
    %211 = vmatprep.subr.bf16.mxu0 0
    %212 = vmatpush1.bf16.msra.mxu0 0
    %213 = vmatprep.subr.bf16.mxu0 0
    %214 = vmatpush1.bf16.msra.mxu0 0
    %215 = vmatprep.subr.bf16.mxu0 0
    %216 = vmatpush1.bf16.msra.mxu0 0
    %217 = vmatprep.subr.bf16.mxu0 0
    %218 = vmatpush1.bf16.msra.mxu0 0
    %219 = vmatprep.subr.bf16.mxu0 0
    %220 = vmatpush1.bf16.msra.mxu0 0
    %221 = vmatprep.subr.bf16.mxu0 0
    %222 = vmatpush1.bf16.msra.mxu0 0
    %223 = vmatprep.subr.bf16.mxu0 0
    %224 = vmatpush1.bf16.msra.mxu0 0
    %225 = vmatprep.subr.bf16.mxu0 0
    %226 = vmatpush1.bf16.msra.mxu0 0
    %227 = vmatprep.subr.bf16.mxu0 0
    %228 = vmatpush1.bf16.msra.mxu0 0
    %229 = vmatprep.subr.bf16.mxu0 0
    %230 = vmatpush1.bf16.msra.mxu0 0
    %231 = vmatprep.subr.bf16.mxu0 0
    %232 = vmatpush1.bf16.msra.mxu0 0
    %233 = vmatprep.subr.bf16.mxu0 0
    %234 = vmatpush1.bf16.msra.mxu0 0
    %235 = vmatprep.subr.bf16.mxu0 0
    %236 = vmatpush1.bf16.msra.mxu0 0
    %237 = vmatprep.mubr.bf16.mxu0 0
    %238 = vmatmul.mubr.bf16.gmra.mrb[0].mxu0 %v203
    %v239 = vpop.f32.mrb[0].mxu0
    %v240 = vadd.f32 %v182, %v239
    %v241 = vpop.f32.mrb[0].mxu0
    %v242 = vpop.f32.mrb[0].mxu0
    %v243 = vpop.f32.mrb[0].mxu0
    %244 = vdwg.mxu0
    %vm245 = vcmask 130048
    %246 = vst.msk [vmem:[#allocation2] sm:$0xff] %vm245, %v240
    // Predicated region
    $region10: #{network_forward.1} parent=1 // pred_check
      _
    $region11: #{network_forward.1} parent=1 // pred_check_branch
      %248 = sbr.rel (0) target = $region13
    $region12: #{network_forward.1} parent=1 // pred_region
      %s250 = ssub.s32 128, 128
      %251 = vsyncadd [#allocation3], %s250
      %s253 = sshll.u32 [#allocation2], 4
      %s254 = int_to_ptr.vmem [resolvable:$true] %s253
      %256 = dma.vmem_to_hbm [thread:$0]  %s254, 128, %s2, [#allocation3]
    $region13: #{network_forward.1} parent=1 // pred_fallthru
      _
    // Predicated region
    $region14: #{network_forward.1} parent=1 // pred_check
      _
    $region15: #{network_forward.1} parent=1 // pred_check_branch
      %258 = sbr.rel (0) target = $region17
    $region16: #{network_forward.1} parent=1 // pred_region
      %259 = dma.done [#allocation3], 128
    $region17: #{network_forward.1} parent=1 // pred_fallthru
      _
    %260 = vsyncpa [#allocation3], 1

</llo_original>
